<compile_context>
chip_gen: v7x
topology: tpu7x:2x2x1
jax: 0.10.0
libtpu: 0.0.40
codegen_flags: <defaults>
</compile_context>

<pallas_src>
import functools

import jax
import jax.numpy as jnp
from jax.experimental import pallas as pl
from jax.experimental.pallas import tpu as pltpu

LOG_STD_MAX = 2.0
LOG_STD_MIN = -5.0


def _round_up(x, m):
    return ((x + m - 1) // m) * m


def actor_kernel(x_ref, w1_ref, b1_ref, w2_ref, b2_ref, wh_ref, bh_ref,
                 out_ref, *, act_dim):
    # fc1 + relu (bf16 MXU inputs, f32 accumulation, f32 epilogue)
    h = jnp.dot(x_ref[...], w1_ref[...], preferred_element_type=jnp.float32)
    h = jnp.maximum(h + b1_ref[...], 0.0)

    # fc2 + relu
    h = jnp.dot(h.astype(w2_ref.dtype), w2_ref[...],
                preferred_element_type=jnp.float32)
    h = jnp.maximum(h + b2_ref[...], 0.0)

    # fused heads: [fc_mean | fc_logstd | zero-pad] as one (CH, out_pad) matmul
    y = jnp.dot(h.astype(wh_ref.dtype), wh_ref[...],
                preferred_element_type=jnp.float32)
    y = y + bh_ref[...]

    # tanh + rescale selected only for the logstd lanes via a lane mask so the
    # (tb, out_pad) store stays a single lane-dense, unmasked tile.
    # (tanh on the whole tile is free filler on the EUP slot.)
    ls = LOG_STD_MIN + 0.5 * (LOG_STD_MAX - LOG_STD_MIN) * (jnp.tanh(y) + 1.0)
    lane = jax.lax.broadcasted_iota(jnp.int32, y.shape, 1)
    is_logstd = jnp.logical_and(lane >= act_dim, lane < 2 * act_dim)
    out_ref[...] = jnp.where(is_logstd, ls, y)


def prepare_actor_params(params, *, compute_dtype=jnp.bfloat16):
    """One-time prep (hoisted out of the forward hot path).

    Fuses the mean/logstd heads into a single matmul, zero-pads the fused head
    to a lane-dense (multiple-of-128) output width, and casts weights to the
    MXU compute dtype. Call once at init / after each optimizer step.
    """
    act_dim = params["wm"].shape[1]
    out_dim = 2 * act_dim
    out_pad = max(128, _round_up(out_dim, 128))

    w_head = jnp.concatenate([params["wm"], params["wl"]], axis=1)
    b_head = jnp.concatenate([params["bm"], params["bl"]], axis=1)
    w_head = jnp.pad(w_head, ((0, 0), (0, out_pad - out_dim)))
    b_head = jnp.pad(b_head, ((0, 0), (0, out_pad - out_dim)))

    return dict(
        w1=params["w1"].astype(compute_dtype),
        b1=params["b1"].astype(jnp.float32),
        w2=params["w2"].astype(compute_dtype),
        b2=params["b2"].astype(jnp.float32),
        wh=w_head.astype(compute_dtype),
        bh=b_head.astype(jnp.float32),
        act_dim=act_dim,
        out_pad=out_pad,
    )


def actor_forward(x, prep, *, block_b=512):
    """Actor MLP forward pass as a single batch-tiled Pallas kernel.

    x: (B, obs_dim) float32
    prep: output of prepare_actor_params (pre-fused / pre-cast weights).
    Returns (mean, log_std), each (B, act_dim) float32.
    """
    B, obs_dim = x.shape
    ch = prep["w1"].shape[1]
    act_dim = prep["act_dim"]
    out_pad = prep["out_pad"]
    compute_dtype = prep["w1"].dtype
    itemsize = jnp.dtype(compute_dtype).itemsize

    xc = x.astype(compute_dtype)

    # Batch tile: multiple of 16 (bf16 sublane packing). For large batches pick
    # the tile so the parallel grid axis has >=2 steps (v7x has 2 TensorCores);
    # for small batches use a single tile (per-step overhead dominates).
    if B >= 256:
        tb = min(block_b, _round_up(pl.cdiv(B, 2), 16))
    else:
        tb = min(block_b, _round_up(B, 16))
    tb = max(16, _round_up(tb, 16))
    num_blocks = pl.cdiv(B, tb)
    b_pad = num_blocks * tb
    if b_pad != B:
        xc = jnp.pad(xc, ((0, b_pad - B), (0, 0)))

    args = (xc, prep["w1"], prep["b1"], prep["w2"], prep["b2"],
            prep["wh"], prep["bh"])

    # Explicit VMEM budget (single-buffered weights, double-buffered x/out,
    # f32 intermediates), with 2x headroom, clamped to v7x's 64 MiB.
    weight_bytes = ((prep["w1"].size + prep["w2"].size + prep["wh"].size) * itemsize
                    + (prep["b1"].size + prep["b2"].size + prep["bh"].size) * 4)
    stream_bytes = 2 * (tb * obs_dim * itemsize + tb * out_pad * 4)
    interm_bytes = 2 * tb * ch * 4
    vmem_limit = int(min(max(2 * (weight_bytes + stream_bytes + interm_bytes),
                             8 << 20), 64 << 20))

    flops = 2 * b_pad * (obs_dim * ch + ch * ch + ch * out_pad)
    bytes_accessed = (sum(int(a.size) * a.dtype.itemsize for a in args)
                      + b_pad * out_pad * 4)

    def _weight_spec(shape, single_buffer):
        if single_buffer:
            # Constant-index resident block: single buffer (no point
            # double-buffering a block whose index never changes).
            return pl.BlockSpec(shape, lambda i: (0, 0),
                                pipeline_mode=pl.Buffered(1))
        return pl.BlockSpec(shape, lambda i: (0, 0))

    def _build_call(single_buffer):
        in_specs = [
            pl.BlockSpec((tb, obs_dim), lambda i: (i, 0)),       # x tile (streamed)
            _weight_spec((obs_dim, ch), single_buffer),          # w1
            _weight_spec((1, ch), single_buffer),                # b1
            _weight_spec((ch, ch), single_buffer),               # w2
            _weight_spec((1, ch), single_buffer),                # b2
            _weight_spec((ch, out_pad), single_buffer),          # fused head W
            _weight_spec((1, out_pad), single_buffer),           # fused head b
        ]
        return pl.pallas_call(
            functools.partial(actor_kernel, act_dim=act_dim),
            out_shape=jax.ShapeDtypeStruct((b_pad, out_pad), jnp.float32),
            grid=(num_blocks,),
            in_specs=in_specs,
            out_specs=pl.BlockSpec((tb, out_pad), lambda i: (i, 0)),
            compiler_params=pltpu.CompilerParams(
                dimension_semantics=("parallel",),
                vmem_limit_bytes=vmem_limit),
            cost_estimate=pl.CostEstimate(
                flops=flops,
                transcendentals=b_pad * out_pad,
                bytes_accessed=bytes_accessed),
        )

    try:
        out = _build_call(single_buffer=True)(*args)
    except Exception:  # pl.Buffered(1) support varies across jax versions
        out = _build_call(single_buffer=False)(*args)

    mean = out[:B, :act_dim]
    log_std = out[:B, act_dim:2 * act_dim]
    return mean, log_std


def _linear_init(key, fan_in, fan_out):
    """Deterministic init mimicking torch.nn.Linear default (uniform +/- 1/sqrt(fan_in))."""
    kw, kb = jax.random.split(key)
    bound = 1.0 / jnp.sqrt(jnp.float32(fan_in))
    w = jax.random.uniform(kw, (fan_in, fan_out), jnp.float32, -bound, bound)
    b = jax.random.uniform(kb, (1, fan_out), jnp.float32, -bound, bound)
    return w, b


def init_actor_params(key, obs_dim, ch, act_dim):
    k1, k2, k3, k4 = jax.random.split(key, 4)
    w1, b1 = _linear_init(k1, obs_dim, ch)
    w2, b2 = _linear_init(k2, ch, ch)
    wm, bm = _linear_init(k3, ch, act_dim)
    wl, bl = _linear_init(k4, ch, act_dim)
    return dict(w1=w1, b1=b1, w2=w2, b2=b2, wm=wm, bm=bm, wl=wl, bl=bl)


def actor_forward_ref(x, p):
    """Pure-JAX f32 reference (matches the PyTorch module's math)."""
    h = jnp.maximum(x @ p["w1"] + p["b1"], 0.0)
    h = jnp.maximum(h @ p["w2"] + p["b2"], 0.0)
    mean = h @ p["wm"] + p["bm"]
    ls = jnp.tanh(h @ p["wl"] + p["bl"])
    ls = LOG_STD_MIN + 0.5 * (LOG_STD_MAX - LOG_STD_MIN) * (ls + 1.0)
    return mean, ls


if __name__ == "__main__":
    # Small, forward-consistent shapes: obs_dim=16, hidden ch=32, act_dim=8.
    # B=20 with block_b=16 exercises the batch grid (2 tiles, tb=16) and both
    # the row-padding and the column-padding (out_pad=128) slicing paths.
    B, OBS, CH, ACT = 20, 16, 32, 8

    key = jax.random.PRNGKey(0)
    kx, kp = jax.random.split(key)
    x = jax.random.normal(kx, (B, OBS), jnp.float32)
    params = init_actor_params(kp, OBS, CH, ACT)

    # One-time prep (fused/padded/cast weights) — out of the per-call hot path.
    prep = prepare_actor_params(params)

    mean, log_std = actor_forward(x, prep, block_b=16)
    jax.block_until_ready((mean, log_std))

    mean_ref, log_std_ref = actor_forward_ref(x, params)
    assert mean.shape == (B, ACT) and log_std.shape == (B, ACT)
    # bf16 matmul inputs -> loose tolerance vs the f32 reference.
    assert jnp.allclose(mean, mean_ref, atol=3e-2, rtol=3e-2)
    assert jnp.allclose(log_std, log_std_ref, atol=3e-2, rtol=3e-2)
    assert float(jnp.max(log_std)) <= LOG_STD_MAX + 1e-5
    assert float(jnp.min(log_std)) >= LOG_STD_MIN - 1e-5

    print("KERNEL_OK")
</pallas_src>

<mosaic_0001>
module attributes {stable_mosaic.version = 11 : i64} {
  func.func @actor_kernel(%arg0: i32, %arg1: memref<16x16xbf16, #tpu.memory_space<vmem>>, %arg2: memref<16x32xbf16, #tpu.memory_space<vmem>>, %arg3: memref<1x32xf32, #tpu.memory_space<vmem>>, %arg4: memref<32x32xbf16, #tpu.memory_space<vmem>>, %arg5: memref<1x32xf32, #tpu.memory_space<vmem>>, %arg6: memref<32x128xbf16, #tpu.memory_space<vmem>>, %arg7: memref<1x128xf32, #tpu.memory_space<vmem>>, %arg8: memref<16x128xf32, #tpu.memory_space<vmem>>) attributes {dimension_semantics = [#tpu.dimension_semantics<parallel>], iteration_bounds = array<i64: 2>, scalar_prefetch = 0 : i64, scratch_operands = 0 : i64, tpu.core_type = #tpu.core_type<tc>, window_params = [{transform_indices = @transform_0, window_bounds = array<i64: 16, 16>}, {pipeline_mode = #tpu.pipeline_mode<synchronous>, transform_indices = @transform_1, window_bounds = array<i64: 16, 32>}, {pipeline_mode = #tpu.pipeline_mode<synchronous>, transform_indices = @transform_2, window_bounds = array<i64: 1, 32>}, {pipeline_mode = #tpu.pipeline_mode<synchronous>, transform_indices = @transform_3, window_bounds = array<i64: 32, 32>}, {pipeline_mode = #tpu.pipeline_mode<synchronous>, transform_indices = @transform_4, window_bounds = array<i64: 1, 32>}, {pipeline_mode = #tpu.pipeline_mode<synchronous>, transform_indices = @transform_5, window_bounds = array<i64: 32, 128>}, {pipeline_mode = #tpu.pipeline_mode<synchronous>, transform_indices = @transform_6, window_bounds = array<i64: 1, 128>}, {transform_indices = @transform_7, window_bounds = array<i64: 16, 128>}]} {
    %c0 = arith.constant 0 : index
    %c0_0 = arith.constant 0 : index
    %0 = vector.load %arg1[%c0, %c0_0] : memref<16x16xbf16, #tpu.memory_space<vmem>>, vector<16x16xbf16>
    %c0_1 = arith.constant 0 : index
    %c0_2 = arith.constant 0 : index
    %1 = vector.load %arg2[%c0_1, %c0_2] : memref<16x32xbf16, #tpu.memory_space<vmem>>, vector<16x32xbf16>
    %cst = arith.constant dense<0.000000e+00> : vector<16x32xf32>
    %2 = tpu.matmul %0, %1, %cst {dimension_numbers = #tpu.dot_dimension_numbers<[1], [0], [0], [1], [0, 0, 1, 1], [], []>} : vector<16x16xbf16>, vector<16x32xbf16>, vector<16x32xf32> -> vector<16x32xf32>
    %c0_3 = arith.constant 0 : index
    %c0_4 = arith.constant 0 : index
    %3 = vector.load %arg3[%c0_3, %c0_4] : memref<1x32xf32, #tpu.memory_space<vmem>>, vector<1x32xf32>
    %4 = vector.broadcast %3 : vector<1x32xf32> to vector<16x32xf32>
    %5 = arith.addf %2, %4 : vector<16x32xf32>
    %cst_5 = arith.constant 0.000000e+00 : f32
    %6 = vector.broadcast %cst_5 : f32 to vector<16x32xf32>
    %7 = arith.maximumf %5, %6 : vector<16x32xf32>
    %8 = arith.truncf %7 : vector<16x32xf32> to vector<16x32xbf16>
    %c0_6 = arith.constant 0 : index
    %c0_7 = arith.constant 0 : index
    %9 = vector.load %arg4[%c0_6, %c0_7] : memref<32x32xbf16, #tpu.memory_space<vmem>>, vector<32x32xbf16>
    %cst_8 = arith.constant dense<0.000000e+00> : vector<16x32xf32>
    %10 = tpu.matmul %8, %9, %cst_8 {dimension_numbers = #tpu.dot_dimension_numbers<[1], [0], [0], [1], [0, 0, 1, 1], [], []>} : vector<16x32xbf16>, vector<32x32xbf16>, vector<16x32xf32> -> vector<16x32xf32>
    %c0_9 = arith.constant 0 : index
    %c0_10 = arith.constant 0 : index
    %11 = vector.load %arg5[%c0_9, %c0_10] : memref<1x32xf32, #tpu.memory_space<vmem>>, vector<1x32xf32>
    %12 = vector.broadcast %11 : vector<1x32xf32> to vector<16x32xf32>
    %13 = arith.addf %10, %12 : vector<16x32xf32>
    %cst_11 = arith.constant 0.000000e+00 : f32
    %14 = vector.broadcast %cst_11 : f32 to vector<16x32xf32>
    %15 = arith.maximumf %13, %14 : vector<16x32xf32>
    %16 = arith.truncf %15 : vector<16x32xf32> to vector<16x32xbf16>
    %c0_12 = arith.constant 0 : index
    %c0_13 = arith.constant 0 : index
    %17 = vector.load %arg6[%c0_12, %c0_13] : memref<32x128xbf16, #tpu.memory_space<vmem>>, vector<32x128xbf16>
    %cst_14 = arith.constant dense<0.000000e+00> : vector<16x128xf32>
    %18 = tpu.matmul %16, %17, %cst_14 {dimension_numbers = #tpu.dot_dimension_numbers<[1], [0], [0], [1], [0, 0, 1, 1], [], []>} : vector<16x32xbf16>, vector<32x128xbf16>, vector<16x128xf32> -> vector<16x128xf32>
    %c0_15 = arith.constant 0 : index
    %c0_16 = arith.constant 0 : index
    %19 = vector.load %arg7[%c0_15, %c0_16] : memref<1x128xf32, #tpu.memory_space<vmem>>, vector<1x128xf32>
    %20 = vector.broadcast %19 : vector<1x128xf32> to vector<16x128xf32>
    %21 = arith.addf %18, %20 : vector<16x128xf32>
    %22 = math.tanh %21 : vector<16x128xf32>
    %cst_17 = arith.constant 1.000000e+00 : f32
    %23 = vector.broadcast %cst_17 : f32 to vector<16x128xf32>
    %24 = arith.addf %22, %23 : vector<16x128xf32>
    %cst_18 = arith.constant 3.500000e+00 : f32
    %25 = vector.broadcast %cst_18 : f32 to vector<16x128xf32>
    %26 = arith.mulf %25, %24 : vector<16x128xf32>
    %cst_19 = arith.constant -5.000000e+00 : f32
    %27 = vector.broadcast %cst_19 : f32 to vector<16x128xf32>
    %28 = arith.addf %27, %26 : vector<16x128xf32>
    %29 = tpu.iota {dimensions = array<i32: 1>} : vector<16x128xi32>
    %c8_i32 = arith.constant 8 : i32
    %30 = vector.broadcast %c8_i32 : i32 to vector<16x128xi32>
    %31 = arith.cmpi sge, %29, %30 : vector<16x128xi32>
    %c16_i32 = arith.constant 16 : i32
    %32 = vector.broadcast %c16_i32 : i32 to vector<16x128xi32>
    %33 = arith.cmpi slt, %29, %32 : vector<16x128xi32>
    %34 = arith.andi %31, %33 : vector<16x128xi1>
    %35 = arith.select %34, %28, %21 : vector<16x128xi1>, vector<16x128xf32>
    %c0_20 = arith.constant 0 : index
    %c0_21 = arith.constant 0 : index
    %36 = vector.load %arg8[%c0_20, %c0_21] : memref<16x128xf32, #tpu.memory_space<vmem>>, vector<16x128xf32>
    tpu.vector_store %arg8[%c0_20, %c0_21], %35 {strides = array<i32>} : memref<16x128xf32, #tpu.memory_space<vmem>>, vector<16x128xf32>,
    return
  }
  func.func @transform_0(%arg0: i32) -> (i32, i32) {
    %c0_i32 = arith.constant 0 : i32
    %c0_i32_0 = arith.constant 0 : i32
    return %arg0, %c0_i32 : i32, i32
  }
  func.func @transform_1(%arg0: i32) -> (i32, i32) {
    %c0_i32 = arith.constant 0 : i32
    %c0_i32_0 = arith.constant 0 : i32
    %c0_i32_1 = arith.constant 0 : i32
    return %c0_i32, %c0_i32_0 : i32, i32
  }
  func.func @transform_2(%arg0: i32) -> (i32, i32) {
    %c0_i32 = arith.constant 0 : i32
    %c0_i32_0 = arith.constant 0 : i32
    %c0_i32_1 = arith.constant 0 : i32
    return %c0_i32, %c0_i32_0 : i32, i32
  }
  func.func @transform_3(%arg0: i32) -> (i32, i32) {
    %c0_i32 = arith.constant 0 : i32
    %c0_i32_0 = arith.constant 0 : i32
    %c0_i32_1 = arith.constant 0 : i32
    return %c0_i32, %c0_i32_0 : i32, i32
  }
  func.func @transform_4(%arg0: i32) -> (i32, i32) {
    %c0_i32 = arith.constant 0 : i32
    %c0_i32_0 = arith.constant 0 : i32
    %c0_i32_1 = arith.constant 0 : i32
    return %c0_i32, %c0_i32_0 : i32, i32
  }
  func.func @transform_5(%arg0: i32) -> (i32, i32) {
    %c0_i32 = arith.constant 0 : i32
    %c0_i32_0 = arith.constant 0 : i32
    %c0_i32_1 = arith.constant 0 : i32
    return %c0_i32, %c0_i32_0 : i32, i32
  }
  func.func @transform_6(%arg0: i32) -> (i32, i32) {
    %c0_i32 = arith.constant 0 : i32
    %c0_i32_0 = arith.constant 0 : i32
    %c0_i32_1 = arith.constant 0 : i32
    return %c0_i32, %c0_i32_0 : i32, i32
  }
  func.func @transform_7(%arg0: i32) -> (i32, i32) {
    %c0_i32 = arith.constant 0 : i32
    %c0_i32_0 = arith.constant 0 : i32
    return %arg0, %c0_i32 : i32, i32
  }
}

module attributes {stable_mosaic.version = 11 : i64} {
  func.func @actor_kernel(%arg0: i32, %arg1: memref<16x16xbf16, #tpu.memory_space<vmem>>, %arg2: memref<16x32xbf16, #tpu.memory_space<vmem>>, %arg3: memref<1x32xf32, #tpu.memory_space<vmem>>, %arg4: memref<32x32xbf16, #tpu.memory_space<vmem>>, %arg5: memref<1x32xf32, #tpu.memory_space<vmem>>, %arg6: memref<32x128xbf16, #tpu.memory_space<vmem>>, %arg7: memref<1x128xf32, #tpu.memory_space<vmem>>, %arg8: memref<16x128xf32, #tpu.memory_space<vmem>>) attributes {dimension_semantics = [#tpu.dimension_semantics<parallel>], iteration_bounds = array<i64: 2>, scalar_prefetch = 0 : i64, scratch_operands = 0 : i64, tpu.core_type = #tpu.core_type<tc>, window_params = [{transform_indices = @transform_0, window_bounds = array<i64: 16, 16>}, {pipeline_mode = #tpu.pipeline_mode<synchronous>, transform_indices = @transform_1, window_bounds = array<i64: 16, 32>}, {pipeline_mode = #tpu.pipeline_mode<synchronous>, transform_indices = @transform_2, window_bounds = array<i64: 1, 32>}, {pipeline_mode = #tpu.pipeline_mode<synchronous>, transform_indices = @transform_3, window_bounds = array<i64: 32, 32>}, {pipeline_mode = #tpu.pipeline_mode<synchronous>, transform_indices = @transform_4, window_bounds = array<i64: 1, 32>}, {pipeline_mode = #tpu.pipeline_mode<synchronous>, transform_indices = @transform_5, window_bounds = array<i64: 32, 128>}, {pipeline_mode = #tpu.pipeline_mode<synchronous>, transform_indices = @transform_6, window_bounds = array<i64: 1, 128>}, {transform_indices = @transform_7, window_bounds = array<i64: 16, 128>}]} {
    %c0 = arith.constant 0 : index
    %c0_0 = arith.constant 0 : index
    %0 = vector.load %arg1[%c0, %c0_0] : memref<16x16xbf16, #tpu.memory_space<vmem>>, vector<16x16xbf16>
    %c0_1 = arith.constant 0 : index
    %c0_2 = arith.constant 0 : index
    %1 = vector.load %arg2[%c0_1, %c0_2] : memref<16x32xbf16, #tpu.memory_space<vmem>>, vector<16x32xbf16>
    %cst = arith.constant dense<0.000000e+00> : vector<16x32xf32>
    %2 = tpu.matmul %0, %1, %cst {dimension_numbers = #tpu.dot_dimension_numbers<[1], [0], [0], [1], [0, 0, 1, 1], [], []>} : vector<16x16xbf16>, vector<16x32xbf16>, vector<16x32xf32> -> vector<16x32xf32>
    %c0_3 = arith.constant 0 : index
    %c0_4 = arith.constant 0 : index
    %3 = vector.load %arg3[%c0_3, %c0_4] : memref<1x32xf32, #tpu.memory_space<vmem>>, vector<1x32xf32>
    %4 = vector.broadcast %3 : vector<1x32xf32> to vector<16x32xf32>
    %5 = arith.addf %2, %4 : vector<16x32xf32>
    %cst_5 = arith.constant 0.000000e+00 : f32
    %6 = vector.broadcast %cst_5 : f32 to vector<16x32xf32>
    %7 = arith.maximumf %5, %6 : vector<16x32xf32>
    %8 = arith.truncf %7 : vector<16x32xf32> to vector<16x32xbf16>
    %c0_6 = arith.constant 0 : index
    %c0_7 = arith.constant 0 : index
    %9 = vector.load %arg4[%c0_6, %c0_7] : memref<32x32xbf16, #tpu.memory_space<vmem>>, vector<32x32xbf16>
    %cst_8 = arith.constant dense<0.000000e+00> : vector<16x32xf32>
    %10 = tpu.matmul %8, %9, %cst_8 {dimension_numbers = #tpu.dot_dimension_numbers<[1], [0], [0], [1], [0, 0, 1, 1], [], []>} : vector<16x32xbf16>, vector<32x32xbf16>, vector<16x32xf32> -> vector<16x32xf32>
    %c0_9 = arith.constant 0 : index
    %c0_10 = arith.constant 0 : index
    %11 = vector.load %arg5[%c0_9, %c0_10] : memref<1x32xf32, #tpu.memory_space<vmem>>, vector<1x32xf32>
    %12 = vector.broadcast %11 : vector<1x32xf32> to vector<16x32xf32>
    %13 = arith.addf %10, %12 : vector<16x32xf32>
    %cst_11 = arith.constant 0.000000e+00 : f32
    %14 = vector.broadcast %cst_11 : f32 to vector<16x32xf32>
    %15 = arith.maximumf %13, %14 : vector<16x32xf32>
    %16 = arith.truncf %15 : vector<16x32xf32> to vector<16x32xbf16>
    %c0_12 = arith.constant 0 : index
    %c0_13 = arith.constant 0 : index
    %17 = vector.load %arg6[%c0_12, %c0_13] : memref<32x128xbf16, #tpu.memory_space<vmem>>, vector<32x128xbf16>
    %cst_14 = arith.constant dense<0.000000e+00> : vector<16x128xf32>
    %18 = tpu.matmul %16, %17, %cst_14 {dimension_numbers = #tpu.dot_dimension_numbers<[1], [0], [0], [1], [0, 0, 1, 1], [], []>} : vector<16x32xbf16>, vector<32x128xbf16>, vector<16x128xf32> -> vector<16x128xf32>
    %c0_15 = arith.constant 0 : index
    %c0_16 = arith.constant 0 : index
    %19 = vector.load %arg7[%c0_15, %c0_16] : memref<1x128xf32, #tpu.memory_space<vmem>>, vector<1x128xf32>
    %20 = vector.broadcast %19 : vector<1x128xf32> to vector<16x128xf32>
    %21 = arith.addf %18, %20 : vector<16x128xf32>
    %22 = math.tanh %21 : vector<16x128xf32>
    %cst_17 = arith.constant 1.000000e+00 : f32
    %23 = vector.broadcast %cst_17 : f32 to vector<16x128xf32>
    %24 = arith.addf %22, %23 : vector<16x128xf32>
    %cst_18 = arith.constant 3.500000e+00 : f32
    %25 = vector.broadcast %cst_18 : f32 to vector<16x128xf32>
    %26 = arith.mulf %25, %24 : vector<16x128xf32>
    %cst_19 = arith.constant -5.000000e+00 : f32
    %27 = vector.broadcast %cst_19 : f32 to vector<16x128xf32>
    %28 = arith.addf %27, %26 : vector<16x128xf32>
    %29 = tpu.iota {dimensions = array<i32: 1>} : vector<16x128xi32>
    %c8_i32 = arith.constant 8 : i32
    %30 = vector.broadcast %c8_i32 : i32 to vector<16x128xi32>
    %31 = arith.cmpi sge, %29, %30 : vector<16x128xi32>
    %c16_i32 = arith.constant 16 : i32
    %32 = vector.broadcast %c16_i32 : i32 to vector<16x128xi32>
    %33 = arith.cmpi slt, %29, %32 : vector<16x128xi32>
    %34 = arith.andi %31, %33 : vector<16x128xi1>
    %35 = arith.select %34, %28, %21 : vector<16x128xi1>, vector<16x128xf32>
    %c0_20 = arith.constant 0 : index
    %c0_21 = arith.constant 0 : index
    %36 = vector.load %arg8[%c0_20, %c0_21] : memref<16x128xf32, #tpu.memory_space<vmem>>, vector<16x128xf32>
    tpu.vector_store %arg8[%c0_20, %c0_21], %35 {strides = array<i32>} : memref<16x128xf32, #tpu.memory_space<vmem>>, vector<16x128xf32>,
    return
  }
  func.func @transform_0(%arg0: i32) -> (i32, i32) {
    %c0_i32 = arith.constant 0 : i32
    %c0_i32_0 = arith.constant 0 : i32
    return %arg0, %c0_i32 : i32, i32
  }
  func.func @transform_1(%arg0: i32) -> (i32, i32) {
    %c0_i32 = arith.constant 0 : i32
    %c0_i32_0 = arith.constant 0 : i32
    %c0_i32_1 = arith.constant 0 : i32
    return %c0_i32, %c0_i32_0 : i32, i32
  }
  func.func @transform_2(%arg0: i32) -> (i32, i32) {
    %c0_i32 = arith.constant 0 : i32
    %c0_i32_0 = arith.constant 0 : i32
    %c0_i32_1 = arith.constant 0 : i32
    return %c0_i32, %c0_i32_0 : i32, i32
  }
  func.func @transform_3(%arg0: i32) -> (i32, i32) {
    %c0_i32 = arith.constant 0 : i32
    %c0_i32_0 = arith.constant 0 : i32
    %c0_i32_1 = arith.constant 0 : i32
    return %c0_i32, %c0_i32_0 : i32, i32
  }
  func.func @transform_4(%arg0: i32) -> (i32, i32) {
    %c0_i32 = arith.constant 0 : i32
    %c0_i32_0 = arith.constant 0 : i32
    %c0_i32_1 = arith.constant 0 : i32
    return %c0_i32, %c0_i32_0 : i32, i32
  }
  func.func @transform_5(%arg0: i32) -> (i32, i32) {
    %c0_i32 = arith.constant 0 : i32
    %c0_i32_0 = arith.constant 0 : i32
    %c0_i32_1 = arith.constant 0 : i32
    return %c0_i32, %c0_i32_0 : i32, i32
  }
  func.func @transform_6(%arg0: i32) -> (i32, i32) {
    %c0_i32 = arith.constant 0 : i32
    %c0_i32_0 = arith.constant 0 : i32
    %c0_i32_1 = arith.constant 0 : i32
    return %c0_i32, %c0_i32_0 : i32, i32
  }
  func.func @transform_7(%arg0: i32) -> (i32, i32) {
    %c0_i32 = arith.constant 0 : i32
    %c0_i32_0 = arith.constant 0 : i32
    return %arg0, %c0_i32 : i32, i32
  }
}

</mosaic_0001>

<llo_original>
// kernel: tpu_custom_call.1
$region0: #{tpu_custom_call.1}
  #allocation0 [shape = 'u32[]', space=smem, size = 0x4, offset = 0x4, fixed_abs, tag = 'smem constant byte address 0x4 - core index']
  #allocation1 [shape = 'u32[144,128]{1,0:T(1,128)}', space=vmem, size = 0x12000, scoped, tag = 'internal scratch']
  %s0 = inlined_call_operand.vmem [shape: bf16[32,16], index: 0, kind: input, shape index: {}]
  %s1 = inlined_call_operand.hbm [shape: bf16[16,32], index: 1, kind: input, shape index: {}]
  %s2 = inlined_call_operand.vmem [shape: f32[1,32], index: 2, kind: input, shape index: {}]
  %s3 = inlined_call_operand.vmem [shape: bf16[32,32], index: 3, kind: input, shape index: {}]
  %s4 = inlined_call_operand.vmem [shape: f32[1,32], index: 4, kind: input, shape index: {}]
  %s5 = inlined_call_operand.vmem [shape: bf16[32,128], index: 5, kind: input, shape index: {}]
  %s6 = inlined_call_operand.vmem [shape: f32[1,128], index: 6, kind: input, shape index: {}]
  %s7 = inlined_call_operand.hbm [shape: f32[32,128], index: 7, kind: output, shape index: {}]
  %s8 = sld [smem:[#allocation0]]
  $region65: #{tpu_custom_call.1} parent=0
    _
  %s10 = ssub.s32 1, %s8
  %s11 = scalar_select 0, %s10, %s8
  $region1: #{tpu_custom_call.1} parent=0
    #allocation2 [shape = 'u8[4096]{0}', space=vmem, size = 0x1000, scoped, tag = 'input window, operand 1, single buffered']
    #allocation3 [shape = 's32[2]{0}', space=sflag, size = 0x8, scoped, tag = 'scoped memory for tpu_custom_call.1']
    #allocation4 [shape = 's32[2]{0}', space=sflag, size = 0x8, scoped, tag = 'scoped memory for tpu_custom_call.1']
    #allocation5 [shape = 'u8[16384]{0}', space=vmem, size = 0x4000, scoped, tag = 'output window, operand 0']
    %12 = vsyncpa [#allocation3], 0
    %13 = vsyncpa [#allocation4], 0
    %s14 = scalar_lea.sflag [#allocation4], 1
    %15 = vsyncpa %s14, 0
    loop: start=0, step=1, limit=4
    $region2: #{tpu_custom_call.1} parent=1 // loop_pre_header
      _
    $region3: #{tpu_custom_call.1} parent=1 // loop_header
      %s17 = sphi 0, %s21
      %p18 = scmp.ge.s32.totalorder %s17, 4
      %s27 = sphi 0, %s29
      %s30 = sphi 0, %s27
      %s31 = sphi 0, %s30
      %s47 = sphi 0, %s31
      %s51 = sphi 0, %s51
      %s53 = sphi 0, %s51
      %s54 = sphi 0, %s53
      %s68 = sphi 0, %s54
      %s72 = sphi 0, %s72
      %s74 = sphi 0, %s72
      %s75 = sphi 0, %s74
      %s89 = sphi 0, %s75
      %s93 = sphi 0, %s93
      %s95 = sphi 0, %s93
      %s96 = sphi 0, %s95
      %s110 = sphi 0, %s96
      %s114 = sphi 0, %s114
      %s116 = sphi 0, %s114
      %s117 = sphi 0, %s116
      %s131 = sphi 0, %s117
      %s135 = sphi 0, %s135
      %s137 = sphi 0, %s135
      %s138 = sphi 0, %s137
      %s152 = sphi 0, %s138
      %s156 = sphi 0, %s156
      %s158 = sphi 0, %s156
      %s159 = sphi 0, %s158
      %s173 = sphi 0, %s159
      %s179 = sphi 0, %s181
      %s182 = sphi 0, %s179
      %s183 = sphi 0, %s182
      %s199 = sphi 0, %s183
    $region4: #{tpu_custom_call.1} parent=1 // loop_header_branch
      %20 = sbr.rel (%p18) target = $region8
    $region5: #{tpu_custom_call.1} parent=1 // loop_body
      %s22 = ssub.s32 %s17, 1
      %s23 = ssub.s32 %s17, 2
      %s24 = sadd.s32 %s17, 1
      %s25 = ssub.s32 %s17, %s24
      %p26 = scmp.eq.s32.totalorder %s25, 0
      %s28 = sadd.s32 %s27, 1
      %s29 = scalar_select %p26, %s27, %s28
      %p32 = pneg %p26
      %p33 = scmp.eq.s32.totalorder %s17, 1
      %p34 = por %p32, %p33
      %p35 = scmp.ne.s32.totalorder %s27, %s30
      %p36 = scmp.eq.s32.totalorder %s17, 0
      %p37 = por %p35, %p36
      %p38 = scmp.ne.s32.totalorder %s27, %s30
      %p39 = scmp.eq.s32.totalorder %s22, 1
      %p40 = por %p38, %p39
      %p41 = scmp.ne.s32.totalorder %s30, %s31
      %p42 = scmp.eq.s32.totalorder %s22, 0
      %p43 = por %p41, %p42
      %p44 = scmp.ne.s32.totalorder %s30, %s31
      %p45 = scmp.eq.s32.totalorder %s23, 1
      %p46 = por %p44, %p45
      %p48 = scmp.ne.s32.totalorder %s31, %s47
      %p49 = scmp.eq.s32.totalorder %s23, 0
      %p50 = por %p48, %p49
      %s52 = sadd.s32 %s51, 1
      %p55 = scmp.eq.s32.totalorder %s17, 1
      %p56 = scmp.ne.s32.totalorder %s51, %s53
      %p57 = scmp.eq.s32.totalorder %s17, 0
      %p58 = por %p56, %p57
      %p59 = scmp.ne.s32.totalorder %s51, %s53
      %p60 = scmp.eq.s32.totalorder %s22, 1
      %p61 = por %p59, %p60
      %p62 = scmp.ne.s32.totalorder %s53, %s54
      %p63 = scmp.eq.s32.totalorder %s22, 0
      %p64 = por %p62, %p63
      %p65 = scmp.ne.s32.totalorder %s53, %s54
      %p66 = scmp.eq.s32.totalorder %s23, 1
      %p67 = por %p65, %p66
      %p69 = scmp.ne.s32.totalorder %s54, %s68
      %p70 = scmp.eq.s32.totalorder %s23, 0
      %p71 = por %p69, %p70
      %s73 = sadd.s32 %s72, 1
      %p76 = scmp.eq.s32.totalorder %s17, 1
      %p77 = scmp.ne.s32.totalorder %s72, %s74
      %p78 = scmp.eq.s32.totalorder %s17, 0
      %p79 = por %p77, %p78
      %p80 = scmp.ne.s32.totalorder %s72, %s74
      %p81 = scmp.eq.s32.totalorder %s22, 1
      %p82 = por %p80, %p81
      %p83 = scmp.ne.s32.totalorder %s74, %s75
      %p84 = scmp.eq.s32.totalorder %s22, 0
      %p85 = por %p83, %p84
      %p86 = scmp.ne.s32.totalorder %s74, %s75
      %p87 = scmp.eq.s32.totalorder %s23, 1
      %p88 = por %p86, %p87
      %p90 = scmp.ne.s32.totalorder %s75, %s89
      %p91 = scmp.eq.s32.totalorder %s23, 0
      %p92 = por %p90, %p91
      %s94 = sadd.s32 %s93, 1
      %p97 = scmp.eq.s32.totalorder %s17, 1
      %p98 = scmp.ne.s32.totalorder %s93, %s95
      %p99 = scmp.eq.s32.totalorder %s17, 0
      %p100 = por %p98, %p99
      %p101 = scmp.ne.s32.totalorder %s93, %s95
      %p102 = scmp.eq.s32.totalorder %s22, 1
      %p103 = por %p101, %p102
      %p104 = scmp.ne.s32.totalorder %s95, %s96
      %p105 = scmp.eq.s32.totalorder %s22, 0
      %p106 = por %p104, %p105
      %p107 = scmp.ne.s32.totalorder %s95, %s96
      %p108 = scmp.eq.s32.totalorder %s23, 1
      %p109 = por %p107, %p108
      %p111 = scmp.ne.s32.totalorder %s96, %s110
      %p112 = scmp.eq.s32.totalorder %s23, 0
      %p113 = por %p111, %p112
      %s115 = sadd.s32 %s114, 1
      %p118 = scmp.eq.s32.totalorder %s17, 1
      %p119 = scmp.ne.s32.totalorder %s114, %s116
      %p120 = scmp.eq.s32.totalorder %s17, 0
      %p121 = por %p119, %p120
      %p122 = scmp.ne.s32.totalorder %s114, %s116
      %p123 = scmp.eq.s32.totalorder %s22, 1
      %p124 = por %p122, %p123
      %p125 = scmp.ne.s32.totalorder %s116, %s117
      %p126 = scmp.eq.s32.totalorder %s22, 0
      %p127 = por %p125, %p126
      %p128 = scmp.ne.s32.totalorder %s116, %s117
      %p129 = scmp.eq.s32.totalorder %s23, 1
      %p130 = por %p128, %p129
      %p132 = scmp.ne.s32.totalorder %s117, %s131
      %p133 = scmp.eq.s32.totalorder %s23, 0
      %p134 = por %p132, %p133
      %s136 = sadd.s32 %s135, 1
      %p139 = scmp.eq.s32.totalorder %s17, 1
      %p140 = scmp.ne.s32.totalorder %s135, %s137
      %p141 = scmp.eq.s32.totalorder %s17, 0
      %p142 = por %p140, %p141
      %p143 = scmp.ne.s32.totalorder %s135, %s137
      %p144 = scmp.eq.s32.totalorder %s22, 1
      %p145 = por %p143, %p144
      %p146 = scmp.ne.s32.totalorder %s137, %s138
      %p147 = scmp.eq.s32.totalorder %s22, 0
      %p148 = por %p146, %p147
      %p149 = scmp.ne.s32.totalorder %s137, %s138
      %p150 = scmp.eq.s32.totalorder %s23, 1
      %p151 = por %p149, %p150
      %p153 = scmp.ne.s32.totalorder %s138, %s152
      %p154 = scmp.eq.s32.totalorder %s23, 0
      %p155 = por %p153, %p154
      %s157 = sadd.s32 %s156, 1
      %p160 = scmp.eq.s32.totalorder %s17, 1
      %p161 = scmp.ne.s32.totalorder %s156, %s158
      %p162 = scmp.eq.s32.totalorder %s17, 0
      %p163 = por %p161, %p162
      %p164 = scmp.ne.s32.totalorder %s156, %s158
      %p165 = scmp.eq.s32.totalorder %s22, 1
      %p166 = por %p164, %p165
      %p167 = scmp.ne.s32.totalorder %s158, %s159
      %p168 = scmp.eq.s32.totalorder %s22, 0
      %p169 = por %p167, %p168
      %p170 = scmp.ne.s32.totalorder %s158, %s159
      %p171 = scmp.eq.s32.totalorder %s23, 1
      %p172 = por %p170, %p171
      %p174 = scmp.ne.s32.totalorder %s159, %s173
      %p175 = scmp.eq.s32.totalorder %s23, 0
      %p176 = por %p174, %p175
      %s177 = ssub.s32 %s17, %s24
      %p178 = scmp.eq.s32.totalorder %s177, 0
      %s180 = sadd.s32 %s179, 1
      %s181 = scalar_select %p178, %s179, %s180
      %p184 = pneg %p178
      %p185 = scmp.eq.s32.totalorder %s17, 1
      %p186 = por %p184, %p185
      %p187 = scmp.ne.s32.totalorder %s179, %s182
      %p188 = scmp.eq.s32.totalorder %s17, 0
      %p189 = por %p187, %p188
      %p190 = scmp.ne.s32.totalorder %s179, %s182
      %p191 = scmp.eq.s32.totalorder %s22, 1
      %p192 = por %p190, %p191
      %p193 = scmp.ne.s32.totalorder %s182, %s183
      %p194 = scmp.eq.s32.totalorder %s22, 0
      %p195 = por %p193, %p194
      %p196 = scmp.ne.s32.totalorder %s182, %s183
      %p197 = scmp.eq.s32.totalorder %s23, 1
      %p198 = por %p196, %p197
      %p200 = scmp.ne.s32.totalorder %s183, %s199
      %p201 = scmp.eq.s32.totalorder %s23, 0
      %p202 = por %p200, %p201
      %p203 = scmp.le.s32.totalorder 1, %s17
      %p204 = scmp.lt.s32.totalorder %s17, 3
      %p205 = pnand %p203, %p204
      %p206 = pneg %p205
      // Predicated region
      $region9: #{tpu_custom_call.1} parent=5 // pred_check
        _
      $region10: #{tpu_custom_call.1} parent=5 // pred_check_branch
        %208 = sbr.rel (%p205) target = $region12
      $region11: #{tpu_custom_call.1} parent=5 // pred_region
        %s209 = ssub.s32 %s17, 1
        // Predicated region
        $region13: #{tpu_custom_call.1} parent=11 // pred_check
          %p210 = pneg %p64
        $region14: #{tpu_custom_call.1} parent=11 // pred_check_branch
          %212 = sbr.rel (%p210) target = $region16
        $region15: #{tpu_custom_call.1} parent=11 // pred_region
          %s214 = ssub.s32 128, 128
          %215 = vsyncadd [#allocation3], %s214
          %s216 = sshll.u32 [#allocation2], 4
          %s217 = int_to_ptr.vmem [resolvable:$true] %s216
          %222 = dma.hbm_to_vmem [thread:$0]  %s1, 128, %s217, [#allocation3], 64, 64, 4
        $region16: #{tpu_custom_call.1} parent=11 // pred_fallthru
          _
        // Predicated region
        $region17: #{tpu_custom_call.1} parent=11 // pred_check
          %p223 = pneg %p85
        $region18: #{tpu_custom_call.1} parent=11 // pred_check_branch
          %225 = sbr.rel (%p223) target = $region20
        $region19: #{tpu_custom_call.1} parent=11 // pred_region
          _
        $region20: #{tpu_custom_call.1} parent=11 // pred_fallthru
          _
        // Predicated region
        $region21: #{tpu_custom_call.1} parent=11 // pred_check
          %p226 = pneg %p106
        $region22: #{tpu_custom_call.1} parent=11 // pred_check_branch
          %228 = sbr.rel (%p226) target = $region24
        $region23: #{tpu_custom_call.1} parent=11 // pred_region
          _
        $region24: #{tpu_custom_call.1} parent=11 // pred_fallthru
          _
        // Predicated region
        $region25: #{tpu_custom_call.1} parent=11 // pred_check
          %p229 = pneg %p127
        $region26: #{tpu_custom_call.1} parent=11 // pred_check_branch
          %231 = sbr.rel (%p229) target = $region28
        $region27: #{tpu_custom_call.1} parent=11 // pred_region
          _
        $region28: #{tpu_custom_call.1} parent=11 // pred_fallthru
          _
        // Predicated region
        $region29: #{tpu_custom_call.1} parent=11 // pred_check
          %p232 = pneg %p148
        $region30: #{tpu_custom_call.1} parent=11 // pred_check_branch
          %234 = sbr.rel (%p232) target = $region32
        $region31: #{tpu_custom_call.1} parent=11 // pred_region
          _
        $region32: #{tpu_custom_call.1} parent=11 // pred_fallthru
          _
        // Predicated region
        $region33: #{tpu_custom_call.1} parent=11 // pred_check
          %p235 = pneg %p169
        $region34: #{tpu_custom_call.1} parent=11 // pred_check_branch
          %237 = sbr.rel (%p235) target = $region36
        $region35: #{tpu_custom_call.1} parent=11 // pred_region
          _
        $region36: #{tpu_custom_call.1} parent=11 // pred_fallthru
          _
      $region12: #{tpu_custom_call.1} parent=5 // pred_fallthru
        _
      %p238 = scmp.lt.s32.totalorder %s17, 2
      // Predicated region
      $region37: #{tpu_custom_call.1} parent=5 // pred_check
        %p239 = pneg %p238
      $region38: #{tpu_custom_call.1} parent=5 // pred_check_branch
        %241 = sbr.rel (%p239) target = $region40
      $region39: #{tpu_custom_call.1} parent=5 // pred_region
        // Predicated region
        $region41: #{tpu_custom_call.1} parent=39 // pred_check
          %p242 = pneg %p37
        $region42: #{tpu_custom_call.1} parent=39 // pred_check_branch
          %244 = sbr.rel (%p242) target = $region44
        $region43: #{tpu_custom_call.1} parent=39 // pred_region
          %s245 = smul.u32 2, %s17
          %p246 = scmp.lt.s32.totalorder %s245, 3
          %s247 = scalar_select %p246, %s245, 3
          %s248 = smul.addr %s247, 4
          %s249 = scalar_lea.vmem %s0, %s248
          %s250 = smul.u32 2, %s17
        $region44: #{tpu_custom_call.1} parent=39 // pred_fallthru
          _
      $region40: #{tpu_custom_call.1} parent=5 // pred_fallthru
        _
      %p251 = scmp.le.s32.totalorder 1, %s17
      %p252 = scmp.lt.s32.totalorder %s17, 3
      %p253 = pnand %p251, %p252
      %p254 = pneg %p253
      // Predicated region
      $region45: #{tpu_custom_call.1} parent=5 // pred_check
        _
      $region46: #{tpu_custom_call.1} parent=5 // pred_check_branch
        %256 = sbr.rel (%p253) target = $region48
      $region47: #{tpu_custom_call.1} parent=5 // pred_region
        %s257 = ssub.s32 %s17, 1
        // Predicated region
        $region49: #{tpu_custom_call.1} parent=47 // pred_check
          %p258 = pneg %p64
        $region50: #{tpu_custom_call.1} parent=47 // pred_check_branch
          %260 = sbr.rel (%p258) target = $region52
        $region51: #{tpu_custom_call.1} parent=47 // pred_region
          %261 = dma.done [#allocation3], 128
        $region52: #{tpu_custom_call.1} parent=47 // pred_fallthru
          _
        %s262 = smul.u32 2, %s22
        %p263 = scmp.lt.s32.totalorder %s262, 3
        %s264 = scalar_select %p263, %s262, 3
        %s265 = smul.addr %s264, 4
        %s266 = scalar_lea.vmem %s0, %s265
        %p267 = pneg %p43
        %p268 = pneg %p40
        %p269 = pneg %p64
        %p270 = pneg %p61
        %p271 = pneg %p85
        %p272 = pneg %p82
        %p273 = pneg %p106
        %p274 = pneg %p103
        %p275 = pneg %p127
        %p276 = pneg %p124
        %p277 = pneg %p148
        %p278 = pneg %p145
        %p279 = pneg %p169
        %p280 = pneg %p166
        %p281 = pneg %p195
        %p282 = pneg %p192
        %s283 = sand.u32 %s182, 1
        %s284 = scalar_lea.sflag [#allocation4], %s283
        %s285 = sand.u32 %s182, 1
        %s286 = smul.addr %s285, 16
        %s287 = scalar_lea.vmem [#allocation5], %s286
        %s288 = smul.u32 2, %s22
        %p289 = scmp.lt.s32.totalorder %s288, 3
        %s290 = scalar_select %p289, %s288, 3
        %s291 = smul.addr %s290, 4
        %s292 = scalar_lea.vmem %s0, %s291
        %s293 = smul.u32 2, %s22
        %s294 = smul.u32 2, %s22
        %v296 = vld [vmem:[%s292] sm:$0xf]
        %v297 = vld [vmem:[%s292 + $0x4] sm:$0xf]
        %v298 = vld [vmem:[#allocation2] sm:$0xf]
        %v299 = vld [vmem:[#allocation2 + $0x4] sm:$0xf]
        %v300 = vld [vmem:[%s2] sm:$0x1]
        %v302 = vlaneseq
        %v303 = vshrl.u32 %v302, 7
        %v304 = vsub.s32 0, %v303
        %v305 = vrot.slane %v300, %v304
        %v309 = vunpack.c.l.b16 %v296
        %v310 = vunpack.c.l.b16 %v297
        %v311 = vpack.c.b16 %v310, %v309
        %v314 = vunpack.c.l.b16 %v298
        %v315 = vunpack.c.l.b16 %v299
        %v316 = vpack.c.b16 %v315, %v314
        %vm318 = vcmask 130048
        %v320 = vsel %vm318, %v311, 0
        %322 = vmatprep.subr.bf16.mxu0 0
        %323 = vmatpush1.bf16.msra.mxu0 %v316
        %324 = vmatprep.subr.bf16.mxu0 0
        %325 = vmatpush1.bf16.msra.mxu0 0
        %326 = vmatprep.subr.bf16.mxu0 0
        %327 = vmatpush1.bf16.msra.mxu0 0
        %328 = vmatprep.subr.bf16.mxu0 0
        %329 = vmatpush1.bf16.msra.mxu0 0
        %330 = vmatprep.subr.bf16.mxu0 0
        %331 = vmatpush1.bf16.msra.mxu0 0
        %332 = vmatprep.subr.bf16.mxu0 0
        %333 = vmatpush1.bf16.msra.mxu0 0
        %334 = vmatprep.subr.bf16.mxu0 0
        %335 = vmatpush1.bf16.msra.mxu0 0
        %336 = vmatprep.subr.bf16.mxu0 0
        %337 = vmatpush1.bf16.msra.mxu0 0
        %338 = vmatprep.subr.bf16.mxu0 0
        %339 = vmatpush1.bf16.msra.mxu0 0
        %340 = vmatprep.subr.bf16.mxu0 0
        %341 = vmatpush1.bf16.msra.mxu0 0
        %342 = vmatprep.subr.bf16.mxu0 0
        %343 = vmatpush1.bf16.msra.mxu0 0
        %344 = vmatprep.subr.bf16.mxu0 0
        %345 = vmatpush1.bf16.msra.mxu0 0
        %346 = vmatprep.subr.bf16.mxu0 0
        %347 = vmatpush1.bf16.msra.mxu0 0
        %348 = vmatprep.subr.bf16.mxu0 0
        %349 = vmatpush1.bf16.msra.mxu0 0
        %350 = vmatprep.subr.bf16.mxu0 0
        %351 = vmatpush1.bf16.msra.mxu0 0
        %352 = vmatprep.subr.bf16.mxu0 0
        %353 = vmatpush1.bf16.msra.mxu0 0
        %354 = vmatprep.mubr.bf16.mxu0 0
        %355 = vmatmul.mubr.bf16.gmra.mrb[0].mxu0 %v320
        %v356 = vpop.f32.mrb[0].mxu0
        %v357 = vadd.f32 %v305, %v356
        %v358 = vpop.f32.mrb[0].mxu0
        %v359 = vpop.f32.mrb[0].mxu0
        %v360 = vadd.f32 %v305, %v359
        %v361 = vpop.f32.mrb[0].mxu0
        %362 = vdwg.mxu0
        %v363 = vmax.f32 %v357, 0.0
        %v364 = vmax.f32 %v360, 0.0
        %v365 = vpack.c.bf16 %v364, %v363
        %v366 = vld [vmem:[%s3] sm:$0xf]
        %v367 = vld [vmem:[%s3 + $0x4] sm:$0xf]
        %v368 = vld [vmem:[%s3 + $0x8] sm:$0xf]
        %v369 = vld [vmem:[%s3 + $0xc] sm:$0xf]
        %v370 = vld [vmem:[%s4] sm:$0x1]
        %v372 = vlaneseq
        %v373 = vshrl.u32 %v372, 7
        %v374 = vsub.s32 0, %v373
        %v375 = vrot.slane %v370, %v374
        %v381 = vunpack.c.l.b16 %v366
        %v382 = vunpack.c.l.b16 %v367
        %v383 = vunpack.c.l.b16 %v368
        %v384 = vunpack.c.l.b16 %v369
        %v385 = vpack.c.b16 %v382, %v381
        %v386 = vpack.c.b16 %v384, %v383
        %vm389 = vcmask 261120
        %v391 = vsel %vm389, %v365, 0
        %393 = vmatprep.subr.bf16.mxu0 0
        %394 = vmatpush1.bf16.msra.mxu0 %v385
        %395 = vmatprep.subr.bf16.mxu0 0
        %396 = vmatpush1.bf16.msra.mxu0 %v386
        %397 = vmatprep.subr.bf16.mxu0 0
        %398 = vmatpush1.bf16.msra.mxu0 0
        %399 = vmatprep.subr.bf16.mxu0 0
        %400 = vmatpush1.bf16.msra.mxu0 0
        %401 = vmatprep.subr.bf16.mxu0 0
        %402 = vmatpush1.bf16.msra.mxu0 0
        %403 = vmatprep.subr.bf16.mxu0 0
        %404 = vmatpush1.bf16.msra.mxu0 0
        %405 = vmatprep.subr.bf16.mxu0 0
        %406 = vmatpush1.bf16.msra.mxu0 0
        %407 = vmatprep.subr.bf16.mxu0 0
        %408 = vmatpush1.bf16.msra.mxu0 0
        %409 = vmatprep.subr.bf16.mxu0 0
        %410 = vmatpush1.bf16.msra.mxu0 0
        %411 = vmatprep.subr.bf16.mxu0 0
        %412 = vmatpush1.bf16.msra.mxu0 0
        %413 = vmatprep.subr.bf16.mxu0 0
        %414 = vmatpush1.bf16.msra.mxu0 0
        %415 = vmatprep.subr.bf16.mxu0 0
        %416 = vmatpush1.bf16.msra.mxu0 0
        %417 = vmatprep.subr.bf16.mxu0 0
        %418 = vmatpush1.bf16.msra.mxu0 0
        %419 = vmatprep.subr.bf16.mxu0 0
        %420 = vmatpush1.bf16.msra.mxu0 0
        %421 = vmatprep.subr.bf16.mxu0 0
        %422 = vmatpush1.bf16.msra.mxu0 0
        %423 = vmatprep.subr.bf16.mxu0 0
        %424 = vmatpush1.bf16.msra.mxu0 0
        %425 = vmatprep.mubr.bf16.mxu0 0
        %426 = vmatmul.mubr.bf16.gmra.mrb[0].mxu0 %v391
        %v427 = vpop.f32.mrb[0].mxu0
        %v428 = vadd.f32 %v375, %v427
        %v429 = vpop.f32.mrb[0].mxu0
        %v430 = vpop.f32.mrb[0].mxu0
        %v431 = vadd.f32 %v375, %v430
        %v432 = vpop.f32.mrb[0].mxu0
        %433 = vdwg.mxu0
        %v434 = vmax.f32 %v428, 0.0
        %v435 = vmax.f32 %v431, 0.0
        %v436 = vpack.c.bf16 %v435, %v434
        %v437 = vld [vmem:[%s5] sm:$0xf]
        %v438 = vld [vmem:[%s5 + $0x4] sm:$0xf]
        %v439 = vld [vmem:[%s5 + $0x8] sm:$0xf]
        %v440 = vld [vmem:[%s5 + $0xc] sm:$0xf]
        %v441 = vld [vmem:[%s6] sm:$0x1]
        %v443 = vlaneseq
        %v444 = vshrl.u32 %v443, 7
        %v445 = vsub.s32 0, %v444
        %v446 = vrot.slane %v441, %v445
        %v452 = vunpack.c.l.b16 %v437
        %v453 = vunpack.c.l.b16 %v438
        %v454 = vunpack.c.l.b16 %v439
        %v455 = vunpack.c.l.b16 %v440
        %v456 = vpack.c.b16 %v453, %v452
        %v457 = vpack.c.b16 %v455, %v454
        %v461 = vsel %vm389, %v436, 0
        %463 = vmatprep.subr.bf16.mxu0 0
        %464 = vmatpush1.bf16.msra.mxu0 %v456
        %465 = vmatprep.subr.bf16.mxu0 0
        %466 = vmatpush1.bf16.msra.mxu0 %v457
        %467 = vmatprep.subr.bf16.mxu0 0
        %468 = vmatpush1.bf16.msra.mxu0 0
        %469 = vmatprep.subr.bf16.mxu0 0
        %470 = vmatpush1.bf16.msra.mxu0 0
        %471 = vmatprep.subr.bf16.mxu0 0
        %472 = vmatpush1.bf16.msra.mxu0 0
        %473 = vmatprep.subr.bf16.mxu0 0
        %474 = vmatpush1.bf16.msra.mxu0 0
        %475 = vmatprep.subr.bf16.mxu0 0
        %476 = vmatpush1.bf16.msra.mxu0 0
        %477 = vmatprep.subr.bf16.mxu0 0
        %478 = vmatpush1.bf16.msra.mxu0 0
        %479 = vmatprep.subr.bf16.mxu0 0
        %480 = vmatpush1.bf16.msra.mxu0 0
        %481 = vmatprep.subr.bf16.mxu0 0
        %482 = vmatpush1.bf16.msra.mxu0 0
        %483 = vmatprep.subr.bf16.mxu0 0
        %484 = vmatpush1.bf16.msra.mxu0 0
        %485 = vmatprep.subr.bf16.mxu0 0
        %486 = vmatpush1.bf16.msra.mxu0 0
        %487 = vmatprep.subr.bf16.mxu0 0
        %488 = vmatpush1.bf16.msra.mxu0 0
        %489 = vmatprep.subr.bf16.mxu0 0
        %490 = vmatpush1.bf16.msra.mxu0 0
        %491 = vmatprep.subr.bf16.mxu0 0
        %492 = vmatpush1.bf16.msra.mxu0 0
        %493 = vmatprep.subr.bf16.mxu0 0
        %494 = vmatpush1.bf16.msra.mxu0 0
        %495 = vmatprep.mubr.bf16.mxu0 0
        %496 = vmatmul.mubr.bf16.gmra.mrb[0].mxu0 %v461
        %v497 = vpop.f32.mrb[0].mxu0
        %v498 = vadd.f32 %v446, %v497
        %v499 = vpop.f32.mrb[0].mxu0
        %v500 = vpop.f32.mrb[0].mxu0
        %v501 = vadd.f32 %v446, %v500
        %v502 = vpop.f32.mrb[0].mxu0
        %503 = vdwg.mxu0
        %v504 = vtanh.pop %v498
        %v505 = vtanh.pop %v501
        %v506 = vadd.f32 %v504, 1.0
        %v507 = vadd.f32 %v505, 1.0
        %v508 = vmul.f32 %v506, 3.5
        %v509 = vmul.f32 %v507, 3.5
        %v510 = vadd.f32 %v508, -5.0
        %v511 = vadd.f32 %v509, -5.0
        %v512 = vlaneseq
        %v513 = vand.u32 %v512, 127
        %vm514 = vcmp.ge.s32.totalorder %v513, 8
        %vm515 = vcmp.lt.s32.totalorder %v513, 16
        %vm516 = vmand %vm514, %vm515
        %v517 = vsel %vm516, %v510, %v498
        %v518 = vsel %vm516, %v511, %v501
        %519 = vst [vmem:[%s287] sm:$0xff] %v517
        %520 = vst [vmem:[%s287 + $0x8] sm:$0xff] %v518
        %s521 = sand.u32 %s182, 1
        %s522 = scalar_lea.sflag [#allocation4], %s521
        %s523 = sand.u32 %s182, 1
        %s524 = smul.addr %s523, 16
        %s525 = scalar_lea.vmem [#allocation5], %s524
        // Predicated region
        $region53: #{tpu_custom_call.1} parent=47 // pred_check
          %p526 = pneg %p192
        $region54: #{tpu_custom_call.1} parent=47 // pred_check_branch
          %528 = sbr.rel (%p526) target = $region56
        $region55: #{tpu_custom_call.1} parent=47 // pred_region
          %s529 = smul.u32 2, %s22
          %s531 = ssub.s32 256, 256
          %532 = vsyncadd %s522, %s531
          %s533 = smul.addr %s529, 128
          %s534 = scalar_lea.hbm %s7, %s533
          %s535 = sshll.u32 %s525, 4
          %s536 = int_to_ptr.vmem [resolvable:$true] %s535
          %541 = dma.vmem_to_hbm [thread:$0]  %s536, 256, %s534, %s522, 128, 128, 8
        $region56: #{tpu_custom_call.1} parent=47 // pred_fallthru
          _
      $region48: #{tpu_custom_call.1} parent=5 // pred_fallthru
        _
      %p542 = scmp.le.s32.totalorder 2, %s17
      // Predicated region
      $region57: #{tpu_custom_call.1} parent=5 // pred_check
        %p543 = pneg %p542
      $region58: #{tpu_custom_call.1} parent=5 // pred_check_branch
        %545 = sbr.rel (%p543) target = $region60
      $region59: #{tpu_custom_call.1} parent=5 // pred_region
        %s546 = ssub.s32 %s17, 2
        // Predicated region
        $region61: #{tpu_custom_call.1} parent=59 // pred_check
          %p547 = pneg %p198
        $region62: #{tpu_custom_call.1} parent=59 // pred_check_branch
          %549 = sbr.rel (%p547) target = $region64
        $region63: #{tpu_custom_call.1} parent=59 // pred_region
          %s550 = sand.u32 %s183, 1
          %s551 = scalar_lea.sflag [#allocation4], %s550
          %s552 = sand.u32 %s183, 1
          %s553 = smul.addr %s552, 16
          %s554 = scalar_lea.vmem [#allocation5], %s553
          %555 = dma.done %s551, 256
        $region64: #{tpu_custom_call.1} parent=59 // pred_fallthru
          _
      $region60: #{tpu_custom_call.1} parent=5 // pred_fallthru
        _
    $region6: #{tpu_custom_call.1} parent=1 // loop_footer
      %s21 = sadd.s32 1, %s17
    $region7: #{tpu_custom_call.1} parent=1 // loop_footer_branch
      %16 = sbr.rel target = $region3
    $region8: #{tpu_custom_call.1} parent=1 // loop_exit
      _
    %556 = vsyncpa [#allocation3], 1
    %s557 = scalar_lea.sflag [#allocation3], 1
    %558 = vsyncpa %s557, 1
    %559 = vsyncpa [#allocation4], 1
    %s560 = scalar_lea.sflag [#allocation4], 1
    %561 = vsyncpa %s560, 1

// kernel: tpu_custom_call.1
$region0: #{tpu_custom_call.1}
  #allocation0 [shape = 'u32[]', space=smem, size = 0x4, offset = 0x4, fixed_abs, tag = 'smem constant byte address 0x4 - core index']
  #allocation1 [shape = 'u32[144,128]{1,0:T(1,128)}', space=vmem, size = 0x12000, scoped, tag = 'internal scratch']
  %s0 = inlined_call_operand.vmem [shape: bf16[32,16], index: 0, kind: input, shape index: {}]
  %s1 = inlined_call_operand.hbm [shape: bf16[16,32], index: 1, kind: input, shape index: {}]
  %s2 = inlined_call_operand.vmem [shape: f32[1,32], index: 2, kind: input, shape index: {}]
  %s3 = inlined_call_operand.vmem [shape: bf16[32,32], index: 3, kind: input, shape index: {}]
  %s4 = inlined_call_operand.vmem [shape: f32[1,32], index: 4, kind: input, shape index: {}]
  %s5 = inlined_call_operand.vmem [shape: bf16[32,128], index: 5, kind: input, shape index: {}]
  %s6 = inlined_call_operand.vmem [shape: f32[1,128], index: 6, kind: input, shape index: {}]
  %s7 = inlined_call_operand.hbm [shape: f32[32,128], index: 7, kind: output, shape index: {}]
  %s8 = sld [smem:[#allocation0]]
  $region65: #{tpu_custom_call.1} parent=0
    _
  %s10 = ssub.s32 1, %s8
  %s11 = scalar_select 0, %s10, %s8
  $region1: #{tpu_custom_call.1} parent=0
    #allocation2 [shape = 'u8[4096]{0}', space=vmem, size = 0x1000, scoped, tag = 'input window, operand 1, single buffered']
    #allocation3 [shape = 's32[2]{0}', space=sflag, size = 0x8, scoped, tag = 'scoped memory for tpu_custom_call.1']
    #allocation4 [shape = 's32[2]{0}', space=sflag, size = 0x8, scoped, tag = 'scoped memory for tpu_custom_call.1']
    #allocation5 [shape = 'u8[16384]{0}', space=vmem, size = 0x4000, scoped, tag = 'output window, operand 0']
    %12 = vsyncpa [#allocation3], 0
    %13 = vsyncpa [#allocation4], 0
    %s14 = scalar_lea.sflag [#allocation4], 1
    %15 = vsyncpa %s14, 0
    loop: start=0, step=1, limit=4
    $region2: #{tpu_custom_call.1} parent=1 // loop_pre_header
      _
    $region3: #{tpu_custom_call.1} parent=1 // loop_header
      %s17 = sphi 0, %s21
      %p18 = scmp.ge.s32.totalorder %s17, 4
      %s27 = sphi 0, %s29
      %s30 = sphi 0, %s27
      %s31 = sphi 0, %s30
      %s47 = sphi 0, %s31
      %s51 = sphi 0, %s51
      %s53 = sphi 0, %s51
      %s54 = sphi 0, %s53
      %s68 = sphi 0, %s54
      %s72 = sphi 0, %s72
      %s74 = sphi 0, %s72
      %s75 = sphi 0, %s74
      %s89 = sphi 0, %s75
      %s93 = sphi 0, %s93
      %s95 = sphi 0, %s93
      %s96 = sphi 0, %s95
      %s110 = sphi 0, %s96
      %s114 = sphi 0, %s114
      %s116 = sphi 0, %s114
      %s117 = sphi 0, %s116
      %s131 = sphi 0, %s117
      %s135 = sphi 0, %s135
      %s137 = sphi 0, %s135
      %s138 = sphi 0, %s137
      %s152 = sphi 0, %s138
      %s156 = sphi 0, %s156
      %s158 = sphi 0, %s156
      %s159 = sphi 0, %s158
      %s173 = sphi 0, %s159
      %s179 = sphi 0, %s181
      %s182 = sphi 0, %s179
      %s183 = sphi 0, %s182
      %s199 = sphi 0, %s183
    $region4: #{tpu_custom_call.1} parent=1 // loop_header_branch
      %20 = sbr.rel (%p18) target = $region8
    $region5: #{tpu_custom_call.1} parent=1 // loop_body
      %s22 = ssub.s32 %s17, 1
      %s23 = ssub.s32 %s17, 2
      %s24 = sadd.s32 %s17, 1
      %s25 = ssub.s32 %s17, %s24
      %p26 = scmp.eq.s32.totalorder %s25, 0
      %s28 = sadd.s32 %s27, 1
      %s29 = scalar_select %p26, %s27, %s28
      %p32 = pneg %p26
      %p33 = scmp.eq.s32.totalorder %s17, 1
      %p34 = por %p32, %p33
      %p35 = scmp.ne.s32.totalorder %s27, %s30
      %p36 = scmp.eq.s32.totalorder %s17, 0
      %p37 = por %p35, %p36
      %p38 = scmp.ne.s32.totalorder %s27, %s30
      %p39 = scmp.eq.s32.totalorder %s22, 1
      %p40 = por %p38, %p39
      %p41 = scmp.ne.s32.totalorder %s30, %s31
      %p42 = scmp.eq.s32.totalorder %s22, 0
      %p43 = por %p41, %p42
      %p44 = scmp.ne.s32.totalorder %s30, %s31
      %p45 = scmp.eq.s32.totalorder %s23, 1
      %p46 = por %p44, %p45
      %p48 = scmp.ne.s32.totalorder %s31, %s47
      %p49 = scmp.eq.s32.totalorder %s23, 0
      %p50 = por %p48, %p49
      %s52 = sadd.s32 %s51, 1
      %p55 = scmp.eq.s32.totalorder %s17, 1
      %p56 = scmp.ne.s32.totalorder %s51, %s53
      %p57 = scmp.eq.s32.totalorder %s17, 0
      %p58 = por %p56, %p57
      %p59 = scmp.ne.s32.totalorder %s51, %s53
      %p60 = scmp.eq.s32.totalorder %s22, 1
      %p61 = por %p59, %p60
      %p62 = scmp.ne.s32.totalorder %s53, %s54
      %p63 = scmp.eq.s32.totalorder %s22, 0
      %p64 = por %p62, %p63
      %p65 = scmp.ne.s32.totalorder %s53, %s54
      %p66 = scmp.eq.s32.totalorder %s23, 1
      %p67 = por %p65, %p66
      %p69 = scmp.ne.s32.totalorder %s54, %s68
      %p70 = scmp.eq.s32.totalorder %s23, 0
      %p71 = por %p69, %p70
      %s73 = sadd.s32 %s72, 1
      %p76 = scmp.eq.s32.totalorder %s17, 1
      %p77 = scmp.ne.s32.totalorder %s72, %s74
      %p78 = scmp.eq.s32.totalorder %s17, 0
      %p79 = por %p77, %p78
      %p80 = scmp.ne.s32.totalorder %s72, %s74
      %p81 = scmp.eq.s32.totalorder %s22, 1
      %p82 = por %p80, %p81
      %p83 = scmp.ne.s32.totalorder %s74, %s75
      %p84 = scmp.eq.s32.totalorder %s22, 0
      %p85 = por %p83, %p84
      %p86 = scmp.ne.s32.totalorder %s74, %s75
      %p87 = scmp.eq.s32.totalorder %s23, 1
      %p88 = por %p86, %p87
      %p90 = scmp.ne.s32.totalorder %s75, %s89
      %p91 = scmp.eq.s32.totalorder %s23, 0
      %p92 = por %p90, %p91
      %s94 = sadd.s32 %s93, 1
      %p97 = scmp.eq.s32.totalorder %s17, 1
      %p98 = scmp.ne.s32.totalorder %s93, %s95
      %p99 = scmp.eq.s32.totalorder %s17, 0
      %p100 = por %p98, %p99
      %p101 = scmp.ne.s32.totalorder %s93, %s95
      %p102 = scmp.eq.s32.totalorder %s22, 1
      %p103 = por %p101, %p102
      %p104 = scmp.ne.s32.totalorder %s95, %s96
      %p105 = scmp.eq.s32.totalorder %s22, 0
      %p106 = por %p104, %p105
      %p107 = scmp.ne.s32.totalorder %s95, %s96
      %p108 = scmp.eq.s32.totalorder %s23, 1
      %p109 = por %p107, %p108
      %p111 = scmp.ne.s32.totalorder %s96, %s110
      %p112 = scmp.eq.s32.totalorder %s23, 0
      %p113 = por %p111, %p112
      %s115 = sadd.s32 %s114, 1
      %p118 = scmp.eq.s32.totalorder %s17, 1
      %p119 = scmp.ne.s32.totalorder %s114, %s116
      %p120 = scmp.eq.s32.totalorder %s17, 0
      %p121 = por %p119, %p120
      %p122 = scmp.ne.s32.totalorder %s114, %s116
      %p123 = scmp.eq.s32.totalorder %s22, 1
      %p124 = por %p122, %p123
      %p125 = scmp.ne.s32.totalorder %s116, %s117
      %p126 = scmp.eq.s32.totalorder %s22, 0
      %p127 = por %p125, %p126
      %p128 = scmp.ne.s32.totalorder %s116, %s117
      %p129 = scmp.eq.s32.totalorder %s23, 1
      %p130 = por %p128, %p129
      %p132 = scmp.ne.s32.totalorder %s117, %s131
      %p133 = scmp.eq.s32.totalorder %s23, 0
      %p134 = por %p132, %p133
      %s136 = sadd.s32 %s135, 1
      %p139 = scmp.eq.s32.totalorder %s17, 1
      %p140 = scmp.ne.s32.totalorder %s135, %s137
      %p141 = scmp.eq.s32.totalorder %s17, 0
      %p142 = por %p140, %p141
      %p143 = scmp.ne.s32.totalorder %s135, %s137
      %p144 = scmp.eq.s32.totalorder %s22, 1
      %p145 = por %p143, %p144
      %p146 = scmp.ne.s32.totalorder %s137, %s138
      %p147 = scmp.eq.s32.totalorder %s22, 0
      %p148 = por %p146, %p147
      %p149 = scmp.ne.s32.totalorder %s137, %s138
      %p150 = scmp.eq.s32.totalorder %s23, 1
      %p151 = por %p149, %p150
      %p153 = scmp.ne.s32.totalorder %s138, %s152
      %p154 = scmp.eq.s32.totalorder %s23, 0
      %p155 = por %p153, %p154
      %s157 = sadd.s32 %s156, 1
      %p160 = scmp.eq.s32.totalorder %s17, 1
      %p161 = scmp.ne.s32.totalorder %s156, %s158
      %p162 = scmp.eq.s32.totalorder %s17, 0
      %p163 = por %p161, %p162
      %p164 = scmp.ne.s32.totalorder %s156, %s158
      %p165 = scmp.eq.s32.totalorder %s22, 1
      %p166 = por %p164, %p165
      %p167 = scmp.ne.s32.totalorder %s158, %s159
      %p168 = scmp.eq.s32.totalorder %s22, 0
      %p169 = por %p167, %p168
      %p170 = scmp.ne.s32.totalorder %s158, %s159
      %p171 = scmp.eq.s32.totalorder %s23, 1
      %p172 = por %p170, %p171
      %p174 = scmp.ne.s32.totalorder %s159, %s173
      %p175 = scmp.eq.s32.totalorder %s23, 0
      %p176 = por %p174, %p175
      %s177 = ssub.s32 %s17, %s24
      %p178 = scmp.eq.s32.totalorder %s177, 0
      %s180 = sadd.s32 %s179, 1
      %s181 = scalar_select %p178, %s179, %s180
      %p184 = pneg %p178
      %p185 = scmp.eq.s32.totalorder %s17, 1
      %p186 = por %p184, %p185
      %p187 = scmp.ne.s32.totalorder %s179, %s182
      %p188 = scmp.eq.s32.totalorder %s17, 0
      %p189 = por %p187, %p188
      %p190 = scmp.ne.s32.totalorder %s179, %s182
      %p191 = scmp.eq.s32.totalorder %s22, 1
      %p192 = por %p190, %p191
      %p193 = scmp.ne.s32.totalorder %s182, %s183
      %p194 = scmp.eq.s32.totalorder %s22, 0
      %p195 = por %p193, %p194
      %p196 = scmp.ne.s32.totalorder %s182, %s183
      %p197 = scmp.eq.s32.totalorder %s23, 1
      %p198 = por %p196, %p197
      %p200 = scmp.ne.s32.totalorder %s183, %s199
      %p201 = scmp.eq.s32.totalorder %s23, 0
      %p202 = por %p200, %p201
      %p203 = scmp.le.s32.totalorder 1, %s17
      %p204 = scmp.lt.s32.totalorder %s17, 3
      %p205 = pnand %p203, %p204
      %p206 = pneg %p205
      // Predicated region
      $region9: #{tpu_custom_call.1} parent=5 // pred_check
        _
      $region10: #{tpu_custom_call.1} parent=5 // pred_check_branch
        %208 = sbr.rel (%p205) target = $region12
      $region11: #{tpu_custom_call.1} parent=5 // pred_region
        %s209 = ssub.s32 %s17, 1
        // Predicated region
        $region13: #{tpu_custom_call.1} parent=11 // pred_check
          %p210 = pneg %p64
        $region14: #{tpu_custom_call.1} parent=11 // pred_check_branch
          %212 = sbr.rel (%p210) target = $region16
        $region15: #{tpu_custom_call.1} parent=11 // pred_region
          %s214 = ssub.s32 128, 128
          %215 = vsyncadd [#allocation3], %s214
          %s216 = sshll.u32 [#allocation2], 4
          %s217 = int_to_ptr.vmem [resolvable:$true] %s216
          %222 = dma.hbm_to_vmem [thread:$0]  %s1, 128, %s217, [#allocation3], 64, 64, 4
        $region16: #{tpu_custom_call.1} parent=11 // pred_fallthru
          _
        // Predicated region
        $region17: #{tpu_custom_call.1} parent=11 // pred_check
          %p223 = pneg %p85
        $region18: #{tpu_custom_call.1} parent=11 // pred_check_branch
          %225 = sbr.rel (%p223) target = $region20
        $region19: #{tpu_custom_call.1} parent=11 // pred_region
          _
        $region20: #{tpu_custom_call.1} parent=11 // pred_fallthru
          _
        // Predicated region
        $region21: #{tpu_custom_call.1} parent=11 // pred_check
          %p226 = pneg %p106
        $region22: #{tpu_custom_call.1} parent=11 // pred_check_branch
          %228 = sbr.rel (%p226) target = $region24
        $region23: #{tpu_custom_call.1} parent=11 // pred_region
          _
        $region24: #{tpu_custom_call.1} parent=11 // pred_fallthru
          _
        // Predicated region
        $region25: #{tpu_custom_call.1} parent=11 // pred_check
          %p229 = pneg %p127
        $region26: #{tpu_custom_call.1} parent=11 // pred_check_branch
          %231 = sbr.rel (%p229) target = $region28
        $region27: #{tpu_custom_call.1} parent=11 // pred_region
          _
        $region28: #{tpu_custom_call.1} parent=11 // pred_fallthru
          _
        // Predicated region
        $region29: #{tpu_custom_call.1} parent=11 // pred_check
          %p232 = pneg %p148
        $region30: #{tpu_custom_call.1} parent=11 // pred_check_branch
          %234 = sbr.rel (%p232) target = $region32
        $region31: #{tpu_custom_call.1} parent=11 // pred_region
          _
        $region32: #{tpu_custom_call.1} parent=11 // pred_fallthru
          _
        // Predicated region
        $region33: #{tpu_custom_call.1} parent=11 // pred_check
          %p235 = pneg %p169
        $region34: #{tpu_custom_call.1} parent=11 // pred_check_branch
          %237 = sbr.rel (%p235) target = $region36
        $region35: #{tpu_custom_call.1} parent=11 // pred_region
          _
        $region36: #{tpu_custom_call.1} parent=11 // pred_fallthru
          _
      $region12: #{tpu_custom_call.1} parent=5 // pred_fallthru
        _
      %p238 = scmp.lt.s32.totalorder %s17, 2
      // Predicated region
      $region37: #{tpu_custom_call.1} parent=5 // pred_check
        %p239 = pneg %p238
      $region38: #{tpu_custom_call.1} parent=5 // pred_check_branch
        %241 = sbr.rel (%p239) target = $region40
      $region39: #{tpu_custom_call.1} parent=5 // pred_region
        // Predicated region
        $region41: #{tpu_custom_call.1} parent=39 // pred_check
          %p242 = pneg %p37
        $region42: #{tpu_custom_call.1} parent=39 // pred_check_branch
          %244 = sbr.rel (%p242) target = $region44
        $region43: #{tpu_custom_call.1} parent=39 // pred_region
          %s245 = smul.u32 2, %s17
          %p246 = scmp.lt.s32.totalorder %s245, 3
          %s247 = scalar_select %p246, %s245, 3
          %s248 = smul.addr %s247, 4
          %s249 = scalar_lea.vmem %s0, %s248
          %s250 = smul.u32 2, %s17
        $region44: #{tpu_custom_call.1} parent=39 // pred_fallthru
          _
      $region40: #{tpu_custom_call.1} parent=5 // pred_fallthru
        _
      %p251 = scmp.le.s32.totalorder 1, %s17
      %p252 = scmp.lt.s32.totalorder %s17, 3
      %p253 = pnand %p251, %p252
      %p254 = pneg %p253
      // Predicated region
      $region45: #{tpu_custom_call.1} parent=5 // pred_check
        _
      $region46: #{tpu_custom_call.1} parent=5 // pred_check_branch
        %256 = sbr.rel (%p253) target = $region48
      $region47: #{tpu_custom_call.1} parent=5 // pred_region
        %s257 = ssub.s32 %s17, 1
        // Predicated region
        $region49: #{tpu_custom_call.1} parent=47 // pred_check
          %p258 = pneg %p64
        $region50: #{tpu_custom_call.1} parent=47 // pred_check_branch
          %260 = sbr.rel (%p258) target = $region52
        $region51: #{tpu_custom_call.1} parent=47 // pred_region
          %261 = dma.done [#allocation3], 128
        $region52: #{tpu_custom_call.1} parent=47 // pred_fallthru
          _
        %s262 = smul.u32 2, %s22
        %p263 = scmp.lt.s32.totalorder %s262, 3
        %s264 = scalar_select %p263, %s262, 3
        %s265 = smul.addr %s264, 4
        %s266 = scalar_lea.vmem %s0, %s265
        %p267 = pneg %p43
        %p268 = pneg %p40
        %p269 = pneg %p64
        %p270 = pneg %p61
        %p271 = pneg %p85
        %p272 = pneg %p82
        %p273 = pneg %p106
        %p274 = pneg %p103
        %p275 = pneg %p127
        %p276 = pneg %p124
        %p277 = pneg %p148
        %p278 = pneg %p145
        %p279 = pneg %p169
        %p280 = pneg %p166
        %p281 = pneg %p195
        %p282 = pneg %p192
        %s283 = sand.u32 %s182, 1
        %s284 = scalar_lea.sflag [#allocation4], %s283
        %s285 = sand.u32 %s182, 1
        %s286 = smul.addr %s285, 16
        %s287 = scalar_lea.vmem [#allocation5], %s286
        %s288 = smul.u32 2, %s22
        %p289 = scmp.lt.s32.totalorder %s288, 3
        %s290 = scalar_select %p289, %s288, 3
        %s291 = smul.addr %s290, 4
        %s292 = scalar_lea.vmem %s0, %s291
        %s293 = smul.u32 2, %s22
        %s294 = smul.u32 2, %s22
        %v296 = vld [vmem:[%s292] sm:$0xf]
        %v297 = vld [vmem:[%s292 + $0x4] sm:$0xf]
        %v298 = vld [vmem:[#allocation2] sm:$0xf]
        %v299 = vld [vmem:[#allocation2 + $0x4] sm:$0xf]
        %v300 = vld [vmem:[%s2] sm:$0x1]
        %v302 = vlaneseq
        %v303 = vshrl.u32 %v302, 7
        %v304 = vsub.s32 0, %v303
        %v305 = vrot.slane %v300, %v304
        %v309 = vunpack.c.l.b16 %v296
        %v310 = vunpack.c.l.b16 %v297
        %v311 = vpack.c.b16 %v310, %v309
        %v314 = vunpack.c.l.b16 %v298
        %v315 = vunpack.c.l.b16 %v299
        %v316 = vpack.c.b16 %v315, %v314
        %vm318 = vcmask 130048
        %v320 = vsel %vm318, %v311, 0
        %322 = vmatprep.subr.bf16.mxu0 0
        %323 = vmatpush1.bf16.msra.mxu0 %v316
        %324 = vmatprep.subr.bf16.mxu0 0
        %325 = vmatpush1.bf16.msra.mxu0 0
        %326 = vmatprep.subr.bf16.mxu0 0
        %327 = vmatpush1.bf16.msra.mxu0 0
        %328 = vmatprep.subr.bf16.mxu0 0
        %329 = vmatpush1.bf16.msra.mxu0 0
        %330 = vmatprep.subr.bf16.mxu0 0
        %331 = vmatpush1.bf16.msra.mxu0 0
        %332 = vmatprep.subr.bf16.mxu0 0
        %333 = vmatpush1.bf16.msra.mxu0 0
        %334 = vmatprep.subr.bf16.mxu0 0
        %335 = vmatpush1.bf16.msra.mxu0 0
        %336 = vmatprep.subr.bf16.mxu0 0
        %337 = vmatpush1.bf16.msra.mxu0 0
        %338 = vmatprep.subr.bf16.mxu0 0
        %339 = vmatpush1.bf16.msra.mxu0 0
        %340 = vmatprep.subr.bf16.mxu0 0
        %341 = vmatpush1.bf16.msra.mxu0 0
        %342 = vmatprep.subr.bf16.mxu0 0
        %343 = vmatpush1.bf16.msra.mxu0 0
        %344 = vmatprep.subr.bf16.mxu0 0
        %345 = vmatpush1.bf16.msra.mxu0 0
        %346 = vmatprep.subr.bf16.mxu0 0
        %347 = vmatpush1.bf16.msra.mxu0 0
        %348 = vmatprep.subr.bf16.mxu0 0
        %349 = vmatpush1.bf16.msra.mxu0 0
        %350 = vmatprep.subr.bf16.mxu0 0
        %351 = vmatpush1.bf16.msra.mxu0 0
        %352 = vmatprep.subr.bf16.mxu0 0
        %353 = vmatpush1.bf16.msra.mxu0 0
        %354 = vmatprep.mubr.bf16.mxu0 0
        %355 = vmatmul.mubr.bf16.gmra.mrb[0].mxu0 %v320
        %v356 = vpop.f32.mrb[0].mxu0
        %v357 = vadd.f32 %v305, %v356
        %v358 = vpop.f32.mrb[0].mxu0
        %v359 = vpop.f32.mrb[0].mxu0
        %v360 = vadd.f32 %v305, %v359
        %v361 = vpop.f32.mrb[0].mxu0
        %362 = vdwg.mxu0
        %v363 = vmax.f32 %v357, 0.0
        %v364 = vmax.f32 %v360, 0.0
        %v365 = vpack.c.bf16 %v364, %v363
        %v366 = vld [vmem:[%s3] sm:$0xf]
        %v367 = vld [vmem:[%s3 + $0x4] sm:$0xf]
        %v368 = vld [vmem:[%s3 + $0x8] sm:$0xf]
        %v369 = vld [vmem:[%s3 + $0xc] sm:$0xf]
        %v370 = vld [vmem:[%s4] sm:$0x1]
        %v372 = vlaneseq
        %v373 = vshrl.u32 %v372, 7
        %v374 = vsub.s32 0, %v373
        %v375 = vrot.slane %v370, %v374
        %v381 = vunpack.c.l.b16 %v366
        %v382 = vunpack.c.l.b16 %v367
        %v383 = vunpack.c.l.b16 %v368
        %v384 = vunpack.c.l.b16 %v369
        %v385 = vpack.c.b16 %v382, %v381
        %v386 = vpack.c.b16 %v384, %v383
        %vm389 = vcmask 261120
        %v391 = vsel %vm389, %v365, 0
        %393 = vmatprep.subr.bf16.mxu0 0
        %394 = vmatpush1.bf16.msra.mxu0 %v385
        %395 = vmatprep.subr.bf16.mxu0 0
        %396 = vmatpush1.bf16.msra.mxu0 %v386
        %397 = vmatprep.subr.bf16.mxu0 0
        %398 = vmatpush1.bf16.msra.mxu0 0
        %399 = vmatprep.subr.bf16.mxu0 0
        %400 = vmatpush1.bf16.msra.mxu0 0
        %401 = vmatprep.subr.bf16.mxu0 0
        %402 = vmatpush1.bf16.msra.mxu0 0
        %403 = vmatprep.subr.bf16.mxu0 0
        %404 = vmatpush1.bf16.msra.mxu0 0
        %405 = vmatprep.subr.bf16.mxu0 0
        %406 = vmatpush1.bf16.msra.mxu0 0
        %407 = vmatprep.subr.bf16.mxu0 0
        %408 = vmatpush1.bf16.msra.mxu0 0
        %409 = vmatprep.subr.bf16.mxu0 0
        %410 = vmatpush1.bf16.msra.mxu0 0
        %411 = vmatprep.subr.bf16.mxu0 0
        %412 = vmatpush1.bf16.msra.mxu0 0
        %413 = vmatprep.subr.bf16.mxu0 0
        %414 = vmatpush1.bf16.msra.mxu0 0
        %415 = vmatprep.subr.bf16.mxu0 0
        %416 = vmatpush1.bf16.msra.mxu0 0
        %417 = vmatprep.subr.bf16.mxu0 0
        %418 = vmatpush1.bf16.msra.mxu0 0
        %419 = vmatprep.subr.bf16.mxu0 0
        %420 = vmatpush1.bf16.msra.mxu0 0
        %421 = vmatprep.subr.bf16.mxu0 0
        %422 = vmatpush1.bf16.msra.mxu0 0
        %423 = vmatprep.subr.bf16.mxu0 0
        %424 = vmatpush1.bf16.msra.mxu0 0
        %425 = vmatprep.mubr.bf16.mxu0 0
        %426 = vmatmul.mubr.bf16.gmra.mrb[0].mxu0 %v391
        %v427 = vpop.f32.mrb[0].mxu0
        %v428 = vadd.f32 %v375, %v427
        %v429 = vpop.f32.mrb[0].mxu0
        %v430 = vpop.f32.mrb[0].mxu0
        %v431 = vadd.f32 %v375, %v430
        %v432 = vpop.f32.mrb[0].mxu0
        %433 = vdwg.mxu0
        %v434 = vmax.f32 %v428, 0.0
        %v435 = vmax.f32 %v431, 0.0
        %v436 = vpack.c.bf16 %v435, %v434
        %v437 = vld [vmem:[%s5] sm:$0xf]
        %v438 = vld [vmem:[%s5 + $0x4] sm:$0xf]
        %v439 = vld [vmem:[%s5 + $0x8] sm:$0xf]
        %v440 = vld [vmem:[%s5 + $0xc] sm:$0xf]
        %v441 = vld [vmem:[%s6] sm:$0x1]
        %v443 = vlaneseq
        %v444 = vshrl.u32 %v443, 7
        %v445 = vsub.s32 0, %v444
        %v446 = vrot.slane %v441, %v445
        %v452 = vunpack.c.l.b16 %v437
        %v453 = vunpack.c.l.b16 %v438
        %v454 = vunpack.c.l.b16 %v439
        %v455 = vunpack.c.l.b16 %v440
        %v456 = vpack.c.b16 %v453, %v452
        %v457 = vpack.c.b16 %v455, %v454
        %v461 = vsel %vm389, %v436, 0
        %463 = vmatprep.subr.bf16.mxu0 0
        %464 = vmatpush1.bf16.msra.mxu0 %v456
        %465 = vmatprep.subr.bf16.mxu0 0
        %466 = vmatpush1.bf16.msra.mxu0 %v457
        %467 = vmatprep.subr.bf16.mxu0 0
        %468 = vmatpush1.bf16.msra.mxu0 0
        %469 = vmatprep.subr.bf16.mxu0 0
        %470 = vmatpush1.bf16.msra.mxu0 0
        %471 = vmatprep.subr.bf16.mxu0 0
        %472 = vmatpush1.bf16.msra.mxu0 0
        %473 = vmatprep.subr.bf16.mxu0 0
        %474 = vmatpush1.bf16.msra.mxu0 0
        %475 = vmatprep.subr.bf16.mxu0 0
        %476 = vmatpush1.bf16.msra.mxu0 0
        %477 = vmatprep.subr.bf16.mxu0 0
        %478 = vmatpush1.bf16.msra.mxu0 0
        %479 = vmatprep.subr.bf16.mxu0 0
        %480 = vmatpush1.bf16.msra.mxu0 0
        %481 = vmatprep.subr.bf16.mxu0 0
        %482 = vmatpush1.bf16.msra.mxu0 0
        %483 = vmatprep.subr.bf16.mxu0 0
        %484 = vmatpush1.bf16.msra.mxu0 0
        %485 = vmatprep.subr.bf16.mxu0 0
        %486 = vmatpush1.bf16.msra.mxu0 0
        %487 = vmatprep.subr.bf16.mxu0 0
        %488 = vmatpush1.bf16.msra.mxu0 0
        %489 = vmatprep.subr.bf16.mxu0 0
        %490 = vmatpush1.bf16.msra.mxu0 0
        %491 = vmatprep.subr.bf16.mxu0 0
        %492 = vmatpush1.bf16.msra.mxu0 0
        %493 = vmatprep.subr.bf16.mxu0 0
        %494 = vmatpush1.bf16.msra.mxu0 0
        %495 = vmatprep.mubr.bf16.mxu0 0
        %496 = vmatmul.mubr.bf16.gmra.mrb[0].mxu0 %v461
        %v497 = vpop.f32.mrb[0].mxu0
        %v498 = vadd.f32 %v446, %v497
        %v499 = vpop.f32.mrb[0].mxu0
        %v500 = vpop.f32.mrb[0].mxu0
        %v501 = vadd.f32 %v446, %v500
        %v502 = vpop.f32.mrb[0].mxu0
        %503 = vdwg.mxu0
        %v504 = vtanh.pop %v498
        %v505 = vtanh.pop %v501
        %v506 = vadd.f32 %v504, 1.0
        %v507 = vadd.f32 %v505, 1.0
        %v508 = vmul.f32 %v506, 3.5
        %v509 = vmul.f32 %v507, 3.5
        %v510 = vadd.f32 %v508, -5.0
        %v511 = vadd.f32 %v509, -5.0
        %v512 = vlaneseq
        %v513 = vand.u32 %v512, 127
        %vm514 = vcmp.ge.s32.totalorder %v513, 8
        %vm515 = vcmp.lt.s32.totalorder %v513, 16
        %vm516 = vmand %vm514, %vm515
        %v517 = vsel %vm516, %v510, %v498
        %v518 = vsel %vm516, %v511, %v501
        %519 = vst [vmem:[%s287] sm:$0xff] %v517
        %520 = vst [vmem:[%s287 + $0x8] sm:$0xff] %v518
        %s521 = sand.u32 %s182, 1
        %s522 = scalar_lea.sflag [#allocation4], %s521
        %s523 = sand.u32 %s182, 1
        %s524 = smul.addr %s523, 16
        %s525 = scalar_lea.vmem [#allocation5], %s524
        // Predicated region
        $region53: #{tpu_custom_call.1} parent=47 // pred_check
          %p526 = pneg %p192
        $region54: #{tpu_custom_call.1} parent=47 // pred_check_branch
          %528 = sbr.rel (%p526) target = $region56
        $region55: #{tpu_custom_call.1} parent=47 // pred_region
          %s529 = smul.u32 2, %s22
          %s531 = ssub.s32 256, 256
          %532 = vsyncadd %s522, %s531
          %s533 = smul.addr %s529, 128
          %s534 = scalar_lea.hbm %s7, %s533
          %s535 = sshll.u32 %s525, 4
          %s536 = int_to_ptr.vmem [resolvable:$true] %s535
          %541 = dma.vmem_to_hbm [thread:$0]  %s536, 256, %s534, %s522, 128, 128, 8
        $region56: #{tpu_custom_call.1} parent=47 // pred_fallthru
          _
      $region48: #{tpu_custom_call.1} parent=5 // pred_fallthru
        _
      %p542 = scmp.le.s32.totalorder 2, %s17
      // Predicated region
      $region57: #{tpu_custom_call.1} parent=5 // pred_check
        %p543 = pneg %p542
      $region58: #{tpu_custom_call.1} parent=5 // pred_check_branch
        %545 = sbr.rel (%p543) target = $region60
      $region59: #{tpu_custom_call.1} parent=5 // pred_region
        %s546 = ssub.s32 %s17, 2
        // Predicated region
        $region61: #{tpu_custom_call.1} parent=59 // pred_check
          %p547 = pneg %p198
        $region62: #{tpu_custom_call.1} parent=59 // pred_check_branch
          %549 = sbr.rel (%p547) target = $region64
        $region63: #{tpu_custom_call.1} parent=59 // pred_region
          %s550 = sand.u32 %s183, 1
          %s551 = scalar_lea.sflag [#allocation4], %s550
          %s552 = sand.u32 %s183, 1
          %s553 = smul.addr %s552, 16
          %s554 = scalar_lea.vmem [#allocation5], %s553
          %555 = dma.done %s551, 256
        $region64: #{tpu_custom_call.1} parent=59 // pred_fallthru
          _
      $region60: #{tpu_custom_call.1} parent=5 // pred_fallthru
        _
    $region6: #{tpu_custom_call.1} parent=1 // loop_footer
      %s21 = sadd.s32 1, %s17
    $region7: #{tpu_custom_call.1} parent=1 // loop_footer_branch
      %16 = sbr.rel target = $region3
    $region8: #{tpu_custom_call.1} parent=1 // loop_exit
      _
    %556 = vsyncpa [#allocation3], 1
    %s557 = scalar_lea.sflag [#allocation3], 1
    %558 = vsyncpa %s557, 1
    %559 = vsyncpa [#allocation4], 1
    %s560 = scalar_lea.sflag [#allocation4], 1
    %561 = vsyncpa %s560, 1

</llo_original>
